<compile_context>
chip_gen: v5e
topology: v5e:2x2
jax: 0.10.0
libtpu: 0.0.40
codegen_flags: <defaults>
</compile_context>

<pallas_src>
import functools

import numpy as np

import jax
import jax.numpy as jnp
from jax import lax
from jax.experimental import pallas as pl
from jax.experimental.pallas import tpu as pltpu


def _round_up(x, m):
    return ((x + m - 1) // m) * m


# -----------------------------------------------------------------------------
# Kernel
# -----------------------------------------------------------------------------
def _fused_shortcut_kernel(x_ref, *refs, n_layers, kh_taps, pad_rows, h_in,
                           lpad, mxu_dtype, activation_last):
    """Fused conv -> ReLU -> ... -> conv stack for one batch element.

    x_ref : (1, H, lpad)   lane-dense input slab (zero-padded to lpad lanes)
    refs  : B_0, bias_0, ..., B_{L-1}, bias_{L-1}   banded weights (KH, lpad, W*Co) / (1, W*Co)
            o_ref                                    (1, H, W*Co_last) lane-dense output
            slab                                     (H + 2p, lpad) reusable padded VMEM scratch
    """
    w_refs = refs[0:2 * n_layers:2]
    b_refs = refs[1:2 * n_layers:2]
    o_ref = refs[2 * n_layers]
    slab = refs[2 * n_layers + 1]

    p = pad_rows
    h_out = h_in                     # 'same' convs (asserted in the wrapper)

    # Zero ONLY the 2p halo rows; lane padding needs no zeroing because the
    # matching banded-weight rows are zero.  ~2 row stores per step instead of
    # a full-scratch fill (and core-partition safe, unlike program_id == 0).
    if p > 0:
        z = jnp.zeros((p, lpad), slab.dtype)
        slab[0:p, :] = z
        slab[p + h_in:p + h_in + p, :] = z

    y_act = x_ref[0].astype(slab.dtype)      # (H, lpad)
    y = None
    for i in range(n_layers):
        # Interior write at full lane width -> unmasked stores; it fully
        # overwrites the previous layer's interior (halo rows stay zero).
        # TODO(synk): stream in row blocks for detector-scale H.
        slab[p:p + h_in, :] = y_act

        # One MXU matmul per row tap: K = lpad (128, lane aligned).  Zeros in
        # the banded weight implement the W-direction zero padding for free.
        acc = jnp.dot(slab[0:h_out, :].astype(mxu_dtype), w_refs[i][0],
                      preferred_element_type=jnp.float32)
        for kh in range(1, kh_taps):
            acc = acc + jnp.dot(slab[kh:kh + h_out, :].astype(mxu_dtype),
                                w_refs[i][kh],
                                preferred_element_type=jnp.float32)

        y = acc + b_refs[i][...]                  # f32 bias add (v5e-friendly)
        if i < n_layers - 1 or activation_last:
            y = jnp.maximum(y, 0.0)               # f32 ReLU
        y_act = y.astype(slab.dtype)              # next layer's slab contents

    # Lane-dense store: last dim is W*Cout_last (= 128 here) -> unmasked vst.
    o_ref[0] = y.astype(o_ref.dtype)


# -----------------------------------------------------------------------------
# Host-side setup: banded weights, tiled biases, slab geometry
# -----------------------------------------------------------------------------
def _build_stack(params, paddings, in_shape):
    """Precompute (once, on host) the banded weights and geometry."""
    N, C0, H0, W0 = in_shape
    L = len(params)
    assert L == len(paddings) and L >= 1

    ks = [int(w.shape[0]) for (w, _) in params]
    ps = [int(p) for p in paddings]
    cs = [int(C0)] + [int(w.shape[3]) for (w, _) in params]

    # Invariants this fused kernel relies on (hold for the ttf_fcos_head
    # shortcut config: square 'same' convs, shared k/p, stride 1).
    # TODO(synk): general strides / non-'same' convs need per-layer slab
    # geometry and ragged-halo handling.
    assert all(int(w.shape[0]) == int(w.shape[1]) for (w, _) in params)
    assert all(k == ks[0] for k in ks) and all(p == ps[0] for p in ps)
    assert ks[0] == 2 * ps[0] + 1, "fused kernel assumes 'same' convs (k == 2p + 1)"
    for i, (w, _) in enumerate(params):
        assert int(w.shape[2]) == cs[i], "channel chain mismatch"

    lane_w = [W0 * c for c in cs]        # lane_w[i] = input lane width, layer i
    if L > 1:
        lpad = lane_w[1]
        assert all(lw == lpad for lw in lane_w[1:L]), \
            "intermediate activations must share one lane width"
        assert lane_w[0] <= lpad
    else:
        lpad = _round_up(lane_w[0], 128)
    # lpad == 128 for this config; if it were not a multiple of 128 the kernel
    # would still be correct, just with masked lane extents on the matmul LHS.

    banded, biases = [], []
    for (w, b), p in zip(params, ps):
        w_np = np.asarray(w, dtype=np.float32)          # (KH, KW, Cin, Cout)
        b_np = np.asarray(b, dtype=np.float32)
        KH, KW, Ci, Co = w_np.shape
        Bm = np.zeros((KH, lpad, W0 * Co), dtype=np.float32)
        for kh in range(KH):
            for kw in range(KW):
                for wo in range(W0):                    # Wo == W0 ('same')
                    wi = wo + kw - p                    # input W coordinate
                    if 0 <= wi < W0:                    # out of range == pad 0
                        Bm[kh, wi * Ci:(wi + 1) * Ci,
                               wo * Co:(wo + 1) * Co] = w_np[kh, kw]
        banded.append(jnp.asarray(Bm))
        biases.append(jnp.asarray(np.tile(b_np, W0)[None, :]))   # (1, W0*Co)

    geom = dict(n_layers=L, kh_taps=ks[0], pad_rows=ps[0], h_in=H0, w_in=W0,
                lpad=lpad, c_out=cs[-1], out_width=W0 * cs[-1])
    return banded, biases, geom


# -----------------------------------------------------------------------------
# Forward wrapper
# -----------------------------------------------------------------------------
def shortcut_conv2d_forward(x_nchw, banded, biases, geom, *, activation_last,
                            compute_dtype=jnp.float32):
    """Forward matching ShortcutConv2d.forward; input/output NCHW."""
    N, C0, H, W = x_nchw.shape
    L = geom["n_layers"]
    p = geom["pad_rows"]
    lpad = geom["lpad"]
    out_w = geom["out_width"]
    c_out = geom["c_out"]
    assert H == geom["h_in"] and W == geom["w_in"] and W * C0 <= lpad

    # Single boundary transpose + lane-dense reshape for the whole stack; pad
    # layer 0's lane width up to lpad (zero columns <-> zero weight rows).
    # compute_dtype=bf16 here halves the only HBM reads the kernel does.
    x = jnp.transpose(x_nchw, (0, 2, 3, 1)).reshape(N, H, W * C0)
    if W * C0 < lpad:
        x = jnp.pad(x, ((0, 0), (0, 0), (0, lpad - W * C0)))
    x = x.astype(compute_dtype)

    flat_inputs = [x]
    in_specs = [pl.BlockSpec((1, H, lpad), lambda n: (n, 0, 0))]
    for Bm, bias in zip(banded, biases):
        flat_inputs += [Bm.astype(compute_dtype), bias]      # bias stays f32
        in_specs += [pl.BlockSpec(Bm.shape, lambda n: (0, 0, 0)),
                     pl.BlockSpec(bias.shape, lambda n: (0, 0))]

    kernel = functools.partial(
        _fused_shortcut_kernel,
        n_layers=L, kh_taps=geom["kh_taps"], pad_rows=p, h_in=H, lpad=lpad,
        mxu_dtype=compute_dtype, activation_last=activation_last)

    out = pl.pallas_call(
        kernel,
        out_shape=jax.ShapeDtypeStruct((N, H, out_w), x_nchw.dtype),
        grid=(N,),
        in_specs=in_specs,
        out_specs=pl.BlockSpec((1, H, out_w), lambda n: (n, 0, 0)),
        # ONE reusable padded slab shared by all layers (peak = max, not sum).
        scratch_shapes=[pltpu.VMEM((H + 2 * p, lpad), jnp.float32)],
        compiler_params=pltpu.CompilerParams(
            # Keep the batch axis parallel so both v7x TensorCores get work.
            dimension_semantics=("parallel",),
            # Working set is < 2 MiB here; 32 MiB leaves headroom everywhere.
            # TODO(synk): raise to ~48 MiB (v7x) / 64-100 MiB (v5e/v6e) once
            # H-tiling / deeper buffering is added.
            vmem_limit_bytes=32 * 1024 * 1024,
        ),
    )(*flat_inputs)

    out = out.reshape(N, H, W, c_out)            # Wo == W for 'same' convs
    return jnp.transpose(out, (0, 3, 1, 2))      # NHWC -> NCHW


def make_shortcut_conv2d(params, paddings, in_shape, *, activation_last=False,
                         compute_dtype=jnp.float32):
    """Builds the fused forward fn (banded weights precomputed host-side)."""
    banded, biases, geom = _build_stack(params, paddings, in_shape)

    def fwd(x_nchw):
        return shortcut_conv2d_forward(x_nchw, banded, biases, geom,
                                       activation_last=activation_last,
                                       compute_dtype=compute_dtype)

    return jax.jit(fwd)


# -----------------------------------------------------------------------------
# Param init + pure-JAX reference
# -----------------------------------------------------------------------------
def init_shortcut_conv2d_params(key, in_channels, out_channels, kernel_sizes,
                                paddings):
    """Deterministic init mirroring the layer shapes of ShortcutConv2d."""
    assert len(kernel_sizes) == len(paddings)
    params = []
    for i, k in enumerate(kernel_sizes):
        inc = in_channels if i == 0 else out_channels
        key, wk, bk = jax.random.split(key, 3)
        fan_in = inc * k * k
        bound = 1.0 / jnp.sqrt(fan_in)
        # Stored as (KH, KW, Cin, Cout).
        w = jax.random.uniform(wk, (k, k, inc, out_channels), jnp.float32,
                               -bound, bound)
        b = jax.random.uniform(bk, (out_channels,), jnp.float32, -bound, bound)
        params.append((w, b))
    return params


def _reference_forward(x_nchw, params, paddings, activation_last=False):
    """Pure-JAX reference (lax.conv) for correctness checking."""
    n_layers = len(params)
    y = x_nchw
    for i, ((w, b), p) in enumerate(zip(params, paddings)):
        w_oihw = jnp.transpose(w, (3, 2, 0, 1))
        y = lax.conv_general_dilated(
            y, w_oihw, window_strides=(1, 1), padding=[(p, p), (p, p)],
            dimension_numbers=("NCHW", "OIHW", "NCHW"),
        ) + b.reshape(1, -1, 1, 1)
        if (i < n_layers - 1) or activation_last:
            y = jnp.maximum(y, 0.0)
    return y


if __name__ == "__main__":
    # ShortcutConv2d(in_channels=4, out_channels=8,
    #                kernel_sizes=(3, 3), paddings=(1, 1),
    #                activation_last=False)
    in_channels, out_channels = 4, 8
    kernel_sizes, paddings = (3, 3), (1, 1)
    activation_last = False

    key = jax.random.PRNGKey(0)
    key, xk = jax.random.split(key)
    x = jax.random.normal(xk, (2, in_channels, 16, 16), jnp.float32)  # NCHW

    params = init_shortcut_conv2d_params(
        key, in_channels, out_channels, kernel_sizes, paddings
    )

    ref = _reference_forward(x, params, paddings, activation_last)

    # f32 path: exact semantics of the PyTorch module.
    fwd_f32 = make_shortcut_conv2d(params, paddings, x.shape,
                                   activation_last=activation_last,
                                   compute_dtype=jnp.float32)
    out = jax.block_until_ready(fwd_f32(x))
    assert out.shape == ref.shape == (2, out_channels, 16, 16)
    assert jnp.allclose(out, ref, atol=1e-4, rtol=1e-4), "f32 mismatch vs ref"

    # bf16-MXU path (v6e/v7x: halves HBM traffic + weight VMEM); accumulation,
    # bias add and ReLU stay f32 (v5e VPU has no bf16 path).
    fwd_bf16 = make_shortcut_conv2d(params, paddings, x.shape,
                                    activation_last=activation_last,
                                    compute_dtype=jnp.bfloat16)
    out_bf16 = jax.block_until_ready(fwd_bf16(x))
    assert out_bf16.shape == ref.shape
    assert jnp.allclose(out_bf16, ref, atol=5e-2, rtol=5e-2), "bf16 mismatch"

    print("KERNEL_OK")
</pallas_src>

<mosaic_0001>
module attributes {stable_mosaic.version = 11 : i64} {
  func.func @_fused_shortcut_kernel(%arg0: i32, %arg1: memref<1x16x128xf32, #tpu.memory_space<vmem>>, %arg2: memref<3x128x128xf32, #tpu.memory_space<vmem>>, %arg3: memref<1x128xf32, #tpu.memory_space<vmem>>, %arg4: memref<3x128x128xf32, #tpu.memory_space<vmem>>, %arg5: memref<1x128xf32, #tpu.memory_space<vmem>>, %arg6: memref<1x16x128xf32, #tpu.memory_space<vmem>>, %arg7: memref<18x128xf32, #tpu.memory_space<vmem>>) attributes {dimension_semantics = [#tpu.dimension_semantics<parallel>], iteration_bounds = array<i64: 2>, scalar_prefetch = 0 : i64, scratch_operands = 1 : i64, tpu.core_type = #tpu.core_type<tc>, window_params = [{transform_indices = @transform_0, window_bounds = array<i64: 1, 16, 128>}, {pipeline_mode = #tpu.pipeline_mode<synchronous>, transform_indices = @transform_1, window_bounds = array<i64: 3, 128, 128>}, {pipeline_mode = #tpu.pipeline_mode<synchronous>, transform_indices = @transform_2, window_bounds = array<i64: 1, 128>}, {pipeline_mode = #tpu.pipeline_mode<synchronous>, transform_indices = @transform_3, window_bounds = array<i64: 3, 128, 128>}, {pipeline_mode = #tpu.pipeline_mode<synchronous>, transform_indices = @transform_4, window_bounds = array<i64: 1, 128>}, {transform_indices = @transform_5, window_bounds = array<i64: 1, 16, 128>}]} {
    %cst = arith.constant 0.000000e+00 : f32
    %0 = vector.broadcast %cst : f32 to vector<1x128xf32>
    %c0 = arith.constant 0 : index
    %c0_0 = arith.constant 0 : index
    %1 = vector.load %arg7[%c0, %c0_0] : memref<18x128xf32, #tpu.memory_space<vmem>>, vector<1x128xf32>
    tpu.vector_store %arg7[%c0, %c0_0], %0 {strides = array<i32>} : memref<18x128xf32, #tpu.memory_space<vmem>>, vector<1x128xf32>,
    %c17 = arith.constant 17 : index
    %c0_1 = arith.constant 0 : index
    %2 = vector.load %arg7[%c17, %c0_1] : memref<18x128xf32, #tpu.memory_space<vmem>>, vector<1x128xf32>
    tpu.vector_store %arg7[%c17, %c0_1], %0 {strides = array<i32>} : memref<18x128xf32, #tpu.memory_space<vmem>>, vector<1x128xf32>,
    %c0_2 = arith.constant 0 : index
    %c0_3 = arith.constant 0 : index
    %c0_4 = arith.constant 0 : index
    %3 = vector.load %arg1[%c0_2, %c0_3, %c0_4] : memref<1x16x128xf32, #tpu.memory_space<vmem>>, vector<1x16x128xf32>
    %4 = vector.shape_cast %3 : vector<1x16x128xf32> to vector<16x128xf32>
    %c1 = arith.constant 1 : index
    %c0_5 = arith.constant 0 : index
    %5 = vector.load %arg7[%c1, %c0_5] : memref<18x128xf32, #tpu.memory_space<vmem>>, vector<16x128xf32>
    tpu.vector_store %arg7[%c1, %c0_5], %4 {strides = array<i32>} : memref<18x128xf32, #tpu.memory_space<vmem>>, vector<16x128xf32>,
    %c0_6 = arith.constant 0 : index
    %c0_7 = arith.constant 0 : index
    %6 = vector.load %arg7[%c0_6, %c0_7] : memref<18x128xf32, #tpu.memory_space<vmem>>, vector<16x128xf32>
    %c0_8 = arith.constant 0 : index
    %c0_9 = arith.constant 0 : index
    %c0_10 = arith.constant 0 : index
    %7 = vector.load %arg2[%c0_8, %c0_9, %c0_10] : memref<3x128x128xf32, #tpu.memory_space<vmem>>, vector<1x128x128xf32>
    %8 = vector.shape_cast %7 : vector<1x128x128xf32> to vector<128x128xf32>
    %cst_11 = arith.constant dense<0.000000e+00> : vector<16x128xf32>
    %9 = tpu.matmul %6, %8, %cst_11 {dimension_numbers = #tpu.dot_dimension_numbers<[1], [0], [0], [1], [0, 0, 1, 1], [], []>} : vector<16x128xf32>, vector<128x128xf32>, vector<16x128xf32> -> vector<16x128xf32>
    %c1_12 = arith.constant 1 : index
    %c0_13 = arith.constant 0 : index
    %10 = vector.load %arg7[%c1_12, %c0_13] : memref<18x128xf32, #tpu.memory_space<vmem>>, vector<16x128xf32>
    %c1_14 = arith.constant 1 : index
    %c0_15 = arith.constant 0 : index
    %c0_16 = arith.constant 0 : index
    %11 = vector.load %arg2[%c1_14, %c0_15, %c0_16] : memref<3x128x128xf32, #tpu.memory_space<vmem>>, vector<1x128x128xf32>
    %12 = vector.shape_cast %11 : vector<1x128x128xf32> to vector<128x128xf32>
    %cst_17 = arith.constant dense<0.000000e+00> : vector<16x128xf32>
    %13 = tpu.matmul %10, %12, %cst_17 {dimension_numbers = #tpu.dot_dimension_numbers<[1], [0], [0], [1], [0, 0, 1, 1], [], []>} : vector<16x128xf32>, vector<128x128xf32>, vector<16x128xf32> -> vector<16x128xf32>
    %14 = arith.addf %9, %13 : vector<16x128xf32>
    %c2 = arith.constant 2 : index
    %c0_18 = arith.constant 0 : index
    %15 = vector.load %arg7[%c2, %c0_18] : memref<18x128xf32, #tpu.memory_space<vmem>>, vector<16x128xf32>
    %c2_19 = arith.constant 2 : index
    %c0_20 = arith.constant 0 : index
    %c0_21 = arith.constant 0 : index
    %16 = vector.load %arg2[%c2_19, %c0_20, %c0_21] : memref<3x128x128xf32, #tpu.memory_space<vmem>>, vector<1x128x128xf32>
    %17 = vector.shape_cast %16 : vector<1x128x128xf32> to vector<128x128xf32>
    %cst_22 = arith.constant dense<0.000000e+00> : vector<16x128xf32>
    %18 = tpu.matmul %15, %17, %cst_22 {dimension_numbers = #tpu.dot_dimension_numbers<[1], [0], [0], [1], [0, 0, 1, 1], [], []>} : vector<16x128xf32>, vector<128x128xf32>, vector<16x128xf32> -> vector<16x128xf32>
    %19 = arith.addf %14, %18 : vector<16x128xf32>
    %c0_23 = arith.constant 0 : index
    %c0_24 = arith.constant 0 : index
    %20 = vector.load %arg3[%c0_23, %c0_24] : memref<1x128xf32, #tpu.memory_space<vmem>>, vector<1x128xf32>
    %21 = vector.broadcast %20 : vector<1x128xf32> to vector<16x128xf32>
    %22 = arith.addf %19, %21 : vector<16x128xf32>
    %cst_25 = arith.constant 0.000000e+00 : f32
    %23 = vector.broadcast %cst_25 : f32 to vector<16x128xf32>
    %24 = arith.maximumf %22, %23 : vector<16x128xf32>
    %c1_26 = arith.constant 1 : index
    %c0_27 = arith.constant 0 : index
    %25 = vector.load %arg7[%c1_26, %c0_27] : memref<18x128xf32, #tpu.memory_space<vmem>>, vector<16x128xf32>
    tpu.vector_store %arg7[%c1_26, %c0_27], %24 {strides = array<i32>} : memref<18x128xf32, #tpu.memory_space<vmem>>, vector<16x128xf32>,
    %c0_28 = arith.constant 0 : index
    %c0_29 = arith.constant 0 : index
    %26 = vector.load %arg7[%c0_28, %c0_29] : memref<18x128xf32, #tpu.memory_space<vmem>>, vector<16x128xf32>
    %c0_30 = arith.constant 0 : index
    %c0_31 = arith.constant 0 : index
    %c0_32 = arith.constant 0 : index
    %27 = vector.load %arg4[%c0_30, %c0_31, %c0_32] : memref<3x128x128xf32, #tpu.memory_space<vmem>>, vector<1x128x128xf32>
    %28 = vector.shape_cast %27 : vector<1x128x128xf32> to vector<128x128xf32>
    %cst_33 = arith.constant dense<0.000000e+00> : vector<16x128xf32>
    %29 = tpu.matmul %26, %28, %cst_33 {dimension_numbers = #tpu.dot_dimension_numbers<[1], [0], [0], [1], [0, 0, 1, 1], [], []>} : vector<16x128xf32>, vector<128x128xf32>, vector<16x128xf32> -> vector<16x128xf32>
    %c1_34 = arith.constant 1 : index
    %c0_35 = arith.constant 0 : index
    %30 = vector.load %arg7[%c1_34, %c0_35] : memref<18x128xf32, #tpu.memory_space<vmem>>, vector<16x128xf32>
    %c1_36 = arith.constant 1 : index
    %c0_37 = arith.constant 0 : index
    %c0_38 = arith.constant 0 : index
    %31 = vector.load %arg4[%c1_36, %c0_37, %c0_38] : memref<3x128x128xf32, #tpu.memory_space<vmem>>, vector<1x128x128xf32>
    %32 = vector.shape_cast %31 : vector<1x128x128xf32> to vector<128x128xf32>
    %cst_39 = arith.constant dense<0.000000e+00> : vector<16x128xf32>
    %33 = tpu.matmul %30, %32, %cst_39 {dimension_numbers = #tpu.dot_dimension_numbers<[1], [0], [0], [1], [0, 0, 1, 1], [], []>} : vector<16x128xf32>, vector<128x128xf32>, vector<16x128xf32> -> vector<16x128xf32>
    %34 = arith.addf %29, %33 : vector<16x128xf32>
    %c2_40 = arith.constant 2 : index
    %c0_41 = arith.constant 0 : index
    %35 = vector.load %arg7[%c2_40, %c0_41] : memref<18x128xf32, #tpu.memory_space<vmem>>, vector<16x128xf32>
    %c2_42 = arith.constant 2 : index
    %c0_43 = arith.constant 0 : index
    %c0_44 = arith.constant 0 : index
    %36 = vector.load %arg4[%c2_42, %c0_43, %c0_44] : memref<3x128x128xf32, #tpu.memory_space<vmem>>, vector<1x128x128xf32>
    %37 = vector.shape_cast %36 : vector<1x128x128xf32> to vector<128x128xf32>
    %cst_45 = arith.constant dense<0.000000e+00> : vector<16x128xf32>
    %38 = tpu.matmul %35, %37, %cst_45 {dimension_numbers = #tpu.dot_dimension_numbers<[1], [0], [0], [1], [0, 0, 1, 1], [], []>} : vector<16x128xf32>, vector<128x128xf32>, vector<16x128xf32> -> vector<16x128xf32>
    %39 = arith.addf %34, %38 : vector<16x128xf32>
    %c0_46 = arith.constant 0 : index
    %c0_47 = arith.constant 0 : index
    %40 = vector.load %arg5[%c0_46, %c0_47] : memref<1x128xf32, #tpu.memory_space<vmem>>, vector<1x128xf32>
    %41 = vector.broadcast %40 : vector<1x128xf32> to vector<16x128xf32>
    %42 = arith.addf %39, %41 : vector<16x128xf32>
    %c0_48 = arith.constant 0 : index
    %c0_49 = arith.constant 0 : index
    %c0_50 = arith.constant 0 : index
    %43 = vector.load %arg6[%c0_48, %c0_49, %c0_50] : memref<1x16x128xf32, #tpu.memory_space<vmem>>, vector<1x16x128xf32>
    %44 = vector.shape_cast %43 : vector<1x16x128xf32> to vector<16x128xf32>
    %45 = vector.shape_cast %42 : vector<16x128xf32> to vector<1x16x128xf32>
    tpu.vector_store %arg6[%c0_48, %c0_49, %c0_50], %45 {strides = array<i32>} : memref<1x16x128xf32, #tpu.memory_space<vmem>>, vector<1x16x128xf32>,
    return
  }
  func.func @transform_0(%arg0: i32) -> (i32, i32, i32) {
    %c0_i32 = arith.constant 0 : i32
    %c0_i32_0 = arith.constant 0 : i32
    %c0_i32_1 = arith.constant 0 : i32
    return %arg0, %c0_i32, %c0_i32_0 : i32, i32, i32
  }
  func.func @transform_1(%arg0: i32) -> (i32, i32, i32) {
    %c0_i32 = arith.constant 0 : i32
    %c0_i32_0 = arith.constant 0 : i32
    %c0_i32_1 = arith.constant 0 : i32
    %c0_i32_2 = arith.constant 0 : i32
    return %c0_i32, %c0_i32_0, %c0_i32_1 : i32, i32, i32
  }
  func.func @transform_2(%arg0: i32) -> (i32, i32) {
    %c0_i32 = arith.constant 0 : i32
    %c0_i32_0 = arith.constant 0 : i32
    %c0_i32_1 = arith.constant 0 : i32
    return %c0_i32, %c0_i32_0 : i32, i32
  }
  func.func @transform_3(%arg0: i32) -> (i32, i32, i32) {
    %c0_i32 = arith.constant 0 : i32
    %c0_i32_0 = arith.constant 0 : i32
    %c0_i32_1 = arith.constant 0 : i32
    %c0_i32_2 = arith.constant 0 : i32
    return %c0_i32, %c0_i32_0, %c0_i32_1 : i32, i32, i32
  }
  func.func @transform_4(%arg0: i32) -> (i32, i32) {
    %c0_i32 = arith.constant 0 : i32
    %c0_i32_0 = arith.constant 0 : i32
    %c0_i32_1 = arith.constant 0 : i32
    return %c0_i32, %c0_i32_0 : i32, i32
  }
  func.func @transform_5(%arg0: i32) -> (i32, i32, i32) {
    %c0_i32 = arith.constant 0 : i32
    %c0_i32_0 = arith.constant 0 : i32
    %c0_i32_1 = arith.constant 0 : i32
    return %arg0, %c0_i32, %c0_i32_0 : i32, i32, i32
  }
}

</mosaic_0001>

<llo_original>
// kernel: fwd.1
$region0: #{fwd.1}
  #allocation0 [shape = 'u32[]', space=smem, size = 0x4, offset = 0x4, fixed_abs, tag = 'smem constant byte address 0x4 - core index']
  #allocation1 [shape = 'u32[72,128]{1,0:T(1,128)}', space=vmem, size = 0x9000, scoped, tag = 'internal scratch']
  #allocation2 [shape = 'f32[18,128]{1,0:T(8,128)}', space=vmem, size = 0x3000, scoped, tag = 'scratch operand']
  %s0 = inlined_call_operand.vmem [shape: f32[2,16,128], index: 0, kind: input, shape index: {}]
  %s1 = inlined_call_operand.hbm [shape: f32[3,128,128], index: 1, kind: input, shape index: {}]
  %s2 = inlined_call_operand.vmem [shape: f32[1,128], index: 2, kind: input, shape index: {}]
  %s3 = inlined_call_operand.vmem [shape: f32[3,128,128], index: 3, kind: input, shape index: {}]
  %s4 = inlined_call_operand.vmem [shape: f32[1,128], index: 4, kind: input, shape index: {}]
  %s5 = inlined_call_operand.vmem [shape: f32[2,16,128], index: 5, kind: output, shape index: {}]
  %s6 = sld [smem:[#allocation0]]
  $region57: #{fwd.1} parent=0
    _
  %s8 = ssub.s32 1, %s6
  %s9 = scalar_select 0, %s8, %s6
  $region1: #{fwd.1} parent=0
    #allocation3 [shape = 'u8[196608]{0}', space=vmem, size = 0x30000, scoped, tag = 'input window, operand 1, single buffered']
    #allocation4 [shape = 's32[2]{0}', space=sflag, size = 0x8, scoped, tag = 'scoped memory for fwd.1']
    %10 = vsyncpa [#allocation4], 0
    loop: start=0, step=1, limit=4
    $region2: #{fwd.1} parent=1 // loop_pre_header
      _
    $region3: #{fwd.1} parent=1 // loop_header
      %s12 = sphi 0, %s16
      %p13 = scmp.ge.s32.totalorder %s12, 4
      %s22 = sphi 0, %s24
      %s25 = sphi 0, %s22
      %s26 = sphi 0, %s25
      %s42 = sphi 0, %s26
      %s46 = sphi 0, %s46
      %s48 = sphi 0, %s46
      %s49 = sphi 0, %s48
      %s63 = sphi 0, %s49
      %s67 = sphi 0, %s67
      %s69 = sphi 0, %s67
      %s70 = sphi 0, %s69
      %s84 = sphi 0, %s70
      %s88 = sphi 0, %s88
      %s90 = sphi 0, %s88
      %s91 = sphi 0, %s90
      %s105 = sphi 0, %s91
      %s109 = sphi 0, %s109
      %s111 = sphi 0, %s109
      %s112 = sphi 0, %s111
      %s126 = sphi 0, %s112
      %s132 = sphi 0, %s134
      %s135 = sphi 0, %s132
      %s136 = sphi 0, %s135
      %s152 = sphi 0, %s136
    $region4: #{fwd.1} parent=1 // loop_header_branch
      %15 = sbr.rel (%p13) target = $region8
    $region5: #{fwd.1} parent=1 // loop_body
      %s17 = ssub.s32 %s12, 1
      %s18 = ssub.s32 %s12, 2
      %s19 = sadd.s32 %s12, 1
      %s20 = ssub.s32 %s12, %s19
      %p21 = scmp.eq.s32.totalorder %s20, 0
      %s23 = sadd.s32 %s22, 1
      %s24 = scalar_select %p21, %s22, %s23
      %p27 = pneg %p21
      %p28 = scmp.eq.s32.totalorder %s12, 1
      %p29 = por %p27, %p28
      %p30 = scmp.ne.s32.totalorder %s22, %s25
      %p31 = scmp.eq.s32.totalorder %s12, 0
      %p32 = por %p30, %p31
      %p33 = scmp.ne.s32.totalorder %s22, %s25
      %p34 = scmp.eq.s32.totalorder %s17, 1
      %p35 = por %p33, %p34
      %p36 = scmp.ne.s32.totalorder %s25, %s26
      %p37 = scmp.eq.s32.totalorder %s17, 0
      %p38 = por %p36, %p37
      %p39 = scmp.ne.s32.totalorder %s25, %s26
      %p40 = scmp.eq.s32.totalorder %s18, 1
      %p41 = por %p39, %p40
      %p43 = scmp.ne.s32.totalorder %s26, %s42
      %p44 = scmp.eq.s32.totalorder %s18, 0
      %p45 = por %p43, %p44
      %s47 = sadd.s32 %s46, 1
      %p50 = scmp.eq.s32.totalorder %s12, 1
      %p51 = scmp.ne.s32.totalorder %s46, %s48
      %p52 = scmp.eq.s32.totalorder %s12, 0
      %p53 = por %p51, %p52
      %p54 = scmp.ne.s32.totalorder %s46, %s48
      %p55 = scmp.eq.s32.totalorder %s17, 1
      %p56 = por %p54, %p55
      %p57 = scmp.ne.s32.totalorder %s48, %s49
      %p58 = scmp.eq.s32.totalorder %s17, 0
      %p59 = por %p57, %p58
      %p60 = scmp.ne.s32.totalorder %s48, %s49
      %p61 = scmp.eq.s32.totalorder %s18, 1
      %p62 = por %p60, %p61
      %p64 = scmp.ne.s32.totalorder %s49, %s63
      %p65 = scmp.eq.s32.totalorder %s18, 0
      %p66 = por %p64, %p65
      %s68 = sadd.s32 %s67, 1
      %p71 = scmp.eq.s32.totalorder %s12, 1
      %p72 = scmp.ne.s32.totalorder %s67, %s69
      %p73 = scmp.eq.s32.totalorder %s12, 0
      %p74 = por %p72, %p73
      %p75 = scmp.ne.s32.totalorder %s67, %s69
      %p76 = scmp.eq.s32.totalorder %s17, 1
      %p77 = por %p75, %p76
      %p78 = scmp.ne.s32.totalorder %s69, %s70
      %p79 = scmp.eq.s32.totalorder %s17, 0
      %p80 = por %p78, %p79
      %p81 = scmp.ne.s32.totalorder %s69, %s70
      %p82 = scmp.eq.s32.totalorder %s18, 1
      %p83 = por %p81, %p82
      %p85 = scmp.ne.s32.totalorder %s70, %s84
      %p86 = scmp.eq.s32.totalorder %s18, 0
      %p87 = por %p85, %p86
      %s89 = sadd.s32 %s88, 1
      %p92 = scmp.eq.s32.totalorder %s12, 1
      %p93 = scmp.ne.s32.totalorder %s88, %s90
      %p94 = scmp.eq.s32.totalorder %s12, 0
      %p95 = por %p93, %p94
      %p96 = scmp.ne.s32.totalorder %s88, %s90
      %p97 = scmp.eq.s32.totalorder %s17, 1
      %p98 = por %p96, %p97
      %p99 = scmp.ne.s32.totalorder %s90, %s91
      %p100 = scmp.eq.s32.totalorder %s17, 0
      %p101 = por %p99, %p100
      %p102 = scmp.ne.s32.totalorder %s90, %s91
      %p103 = scmp.eq.s32.totalorder %s18, 1
      %p104 = por %p102, %p103
      %p106 = scmp.ne.s32.totalorder %s91, %s105
      %p107 = scmp.eq.s32.totalorder %s18, 0
      %p108 = por %p106, %p107
      %s110 = sadd.s32 %s109, 1
      %p113 = scmp.eq.s32.totalorder %s12, 1
      %p114 = scmp.ne.s32.totalorder %s109, %s111
      %p115 = scmp.eq.s32.totalorder %s12, 0
      %p116 = por %p114, %p115
      %p117 = scmp.ne.s32.totalorder %s109, %s111
      %p118 = scmp.eq.s32.totalorder %s17, 1
      %p119 = por %p117, %p118
      %p120 = scmp.ne.s32.totalorder %s111, %s112
      %p121 = scmp.eq.s32.totalorder %s17, 0
      %p122 = por %p120, %p121
      %p123 = scmp.ne.s32.totalorder %s111, %s112
      %p124 = scmp.eq.s32.totalorder %s18, 1
      %p125 = por %p123, %p124
      %p127 = scmp.ne.s32.totalorder %s112, %s126
      %p128 = scmp.eq.s32.totalorder %s18, 0
      %p129 = por %p127, %p128
      %s130 = ssub.s32 %s12, %s19
      %p131 = scmp.eq.s32.totalorder %s130, 0
      %s133 = sadd.s32 %s132, 1
      %s134 = scalar_select %p131, %s132, %s133
      %p137 = pneg %p131
      %p138 = scmp.eq.s32.totalorder %s12, 1
      %p139 = por %p137, %p138
      %p140 = scmp.ne.s32.totalorder %s132, %s135
      %p141 = scmp.eq.s32.totalorder %s12, 0
      %p142 = por %p140, %p141
      %p143 = scmp.ne.s32.totalorder %s132, %s135
      %p144 = scmp.eq.s32.totalorder %s17, 1
      %p145 = por %p143, %p144
      %p146 = scmp.ne.s32.totalorder %s135, %s136
      %p147 = scmp.eq.s32.totalorder %s17, 0
      %p148 = por %p146, %p147
      %p149 = scmp.ne.s32.totalorder %s135, %s136
      %p150 = scmp.eq.s32.totalorder %s18, 1
      %p151 = por %p149, %p150
      %p153 = scmp.ne.s32.totalorder %s136, %s152
      %p154 = scmp.eq.s32.totalorder %s18, 0
      %p155 = por %p153, %p154
      %p156 = scmp.le.s32.totalorder 1, %s12
      %p157 = scmp.lt.s32.totalorder %s12, 3
      %p158 = pnand %p156, %p157
      %p159 = pneg %p158
      // Predicated region
      $region9: #{fwd.1} parent=5 // pred_check
        _
      $region10: #{fwd.1} parent=5 // pred_check_branch
        %161 = sbr.rel (%p158) target = $region12
      $region11: #{fwd.1} parent=5 // pred_region
        %s162 = ssub.s32 %s12, 1
        // Predicated region
        $region13: #{fwd.1} parent=11 // pred_check
          %p163 = pneg %p59
        $region14: #{fwd.1} parent=11 // pred_check_branch
          %165 = sbr.rel (%p163) target = $region16
        $region15: #{fwd.1} parent=11 // pred_region
          %167 = vsyncadd [#allocation4], 0
          %s168 = sshll.u32 %s1, 4
          %s169 = int_to_ptr.hbm [resolvable:$true] %s168
          %s170 = sshll.u32 [#allocation3], 4
          %s171 = int_to_ptr.vmem [resolvable:$true] %s170
          %176 = dma.hbm_to_vmem [thread:$0]  %s169, 6144, %s171, [#allocation4], 128, 128, 8
        $region16: #{fwd.1} parent=11 // pred_fallthru
          _
        // Predicated region
        $region17: #{fwd.1} parent=11 // pred_check
          %p177 = pneg %p80
        $region18: #{fwd.1} parent=11 // pred_check_branch
          %179 = sbr.rel (%p177) target = $region20
        $region19: #{fwd.1} parent=11 // pred_region
          _
        $region20: #{fwd.1} parent=11 // pred_fallthru
          _
        // Predicated region
        $region21: #{fwd.1} parent=11 // pred_check
          %p180 = pneg %p101
        $region22: #{fwd.1} parent=11 // pred_check_branch
          %182 = sbr.rel (%p180) target = $region24
        $region23: #{fwd.1} parent=11 // pred_region
          _
        $region24: #{fwd.1} parent=11 // pred_fallthru
          _
        // Predicated region
        $region25: #{fwd.1} parent=11 // pred_check
          %p183 = pneg %p122
        $region26: #{fwd.1} parent=11 // pred_check_branch
          %185 = sbr.rel (%p183) target = $region28
        $region27: #{fwd.1} parent=11 // pred_region
          _
        $region28: #{fwd.1} parent=11 // pred_fallthru
          _
      $region12: #{fwd.1} parent=5 // pred_fallthru
        _
      %p186 = scmp.lt.s32.totalorder %s12, 2
      // Predicated region
      $region29: #{fwd.1} parent=5 // pred_check
        %p187 = pneg %p186
      $region30: #{fwd.1} parent=5 // pred_check_branch
        %189 = sbr.rel (%p187) target = $region32
      $region31: #{fwd.1} parent=5 // pred_region
        // Predicated region
        $region33: #{fwd.1} parent=31 // pred_check
          %p190 = pneg %p32
        $region34: #{fwd.1} parent=31 // pred_check_branch
          %192 = sbr.rel (%p190) target = $region36
        $region35: #{fwd.1} parent=31 // pred_region
          %p193 = scmp.lt.s32.totalorder %s12, 1
          %s194 = scalar_select %p193, %s12, 1
          %s195 = smul.addr %s194, 2
          %s196 = smul.addr %s195, 8
          %s197 = scalar_lea.vmem %s0, %s196
        $region36: #{fwd.1} parent=31 // pred_fallthru
          _
      $region32: #{fwd.1} parent=5 // pred_fallthru
        _
      %p198 = scmp.le.s32.totalorder 1, %s12
      %p199 = scmp.lt.s32.totalorder %s12, 3
      %p200 = pnand %p198, %p199
      %p201 = pneg %p200
      // Predicated region
      $region37: #{fwd.1} parent=5 // pred_check
        _
      $region38: #{fwd.1} parent=5 // pred_check_branch
        %203 = sbr.rel (%p200) target = $region40
      $region39: #{fwd.1} parent=5 // pred_region
        %s204 = ssub.s32 %s12, 1
        // Predicated region
        $region41: #{fwd.1} parent=39 // pred_check
          %p205 = pneg %p59
        $region42: #{fwd.1} parent=39 // pred_check_branch
          %207 = sbr.rel (%p205) target = $region44
        $region43: #{fwd.1} parent=39 // pred_region
          %209 = dma.done [#allocation4], 6144
        $region44: #{fwd.1} parent=39 // pred_fallthru
          _
        %p210 = scmp.lt.s32.totalorder %s17, 1
        %s211 = scalar_select %p210, %s17, 1
        %s212 = smul.addr %s211, 2
        %s213 = smul.addr %s212, 8
        %s214 = scalar_lea.vmem %s0, %s213
        %p215 = pneg %p38
        %p216 = pneg %p35
        %p217 = pneg %p59
        %p218 = pneg %p56
        %p219 = pneg %p80
        %p220 = pneg %p77
        %p221 = pneg %p101
        %p222 = pneg %p98
        %p223 = pneg %p122
        %p224 = pneg %p119
        %p225 = pneg %p148
        %p226 = pneg %p145
        %p227 = scmp.lt.s32.totalorder %s17, 1
        %s228 = scalar_select %p227, %s17, 1
        %s229 = smul.addr %s228, 2
        %s230 = smul.addr %s229, 8
        %s231 = scalar_lea.vmem %s5, %s230
        %p232 = scmp.lt.s32.totalorder %s17, 1
        %s233 = scalar_select %p232, %s17, 1
        %s234 = smul.addr %s233, 2
        %s235 = smul.addr %s234, 8
        %s236 = scalar_lea.vmem %s0, %s235
        %p237 = scmp.lt.s32.totalorder %s17, 1
        %s238 = scalar_select %p237, %s17, 1
        %s239 = smul.addr %s238, 2
        %s240 = smul.addr %s239, 8
        %s241 = scalar_lea.vmem %s5, %s240
        %242 = vst [vmem:[#allocation2] sm:$0x1] 0.0
        %243 = vst [vmem:[#allocation2 + $0x11] sm:$0x1] 0.0
        %v244 = vld [vmem:[%s236] sm:$0xff]
        %v245 = vld [vmem:[%s236 + $0x8] sm:$0xff]
        %246 = vst [vmem:[#allocation2 + $0x1] sm:$0xff] %v244
        %247 = vst [vmem:[#allocation2 + $0x9] sm:$0xff] %v245
        %v248 = vld [vmem:[#allocation2] sm:$0xff]
        %v249 = vld [vmem:[#allocation2 + $0x8] sm:$0xff]
        %v250 = vld [vmem:[#allocation3] sm:$0xff]
        %v251 = vld [vmem:[#allocation3 + $0x8] sm:$0xff]
        %v252 = vld [vmem:[#allocation3 + $0x10] sm:$0xff]
        %v253 = vld [vmem:[#allocation3 + $0x18] sm:$0xff]
        %v254 = vld [vmem:[#allocation3 + $0x20] sm:$0xff]
        %v255 = vld [vmem:[#allocation3 + $0x28] sm:$0xff]
        %v256 = vld [vmem:[#allocation3 + $0x30] sm:$0xff]
        %v257 = vld [vmem:[#allocation3 + $0x38] sm:$0xff]
        %v258 = vld [vmem:[#allocation3 + $0x40] sm:$0xff]
        %v259 = vld [vmem:[#allocation3 + $0x48] sm:$0xff]
        %v260 = vld [vmem:[#allocation3 + $0x50] sm:$0xff]
        %v261 = vld [vmem:[#allocation3 + $0x58] sm:$0xff]
        %v262 = vld [vmem:[#allocation3 + $0x60] sm:$0xff]
        %v263 = vld [vmem:[#allocation3 + $0x68] sm:$0xff]
        %v264 = vld [vmem:[#allocation3 + $0x70] sm:$0xff]
        %v265 = vld [vmem:[#allocation3 + $0x78] sm:$0xff]
        %v266 = vld [vmem:[#allocation2 + $0x1] sm:$0xff]
        %v267 = vld [vmem:[#allocation2 + $0x9] sm:$0xff]
        %s268 = scalar_lea.vmem [#allocation3], 128
        %v269 = vld [vmem:[%s268] sm:$0xff]
        %v270 = vld [vmem:[%s268 + $0x8] sm:$0xff]
        %v271 = vld [vmem:[%s268 + $0x10] sm:$0xff]
        %v272 = vld [vmem:[%s268 + $0x18] sm:$0xff]
        %v273 = vld [vmem:[%s268 + $0x20] sm:$0xff]
        %v274 = vld [vmem:[%s268 + $0x28] sm:$0xff]
        %v275 = vld [vmem:[%s268 + $0x30] sm:$0xff]
        %v276 = vld [vmem:[%s268 + $0x38] sm:$0xff]
        %v277 = vld [vmem:[%s268 + $0x40] sm:$0xff]
        %v278 = vld [vmem:[%s268 + $0x48] sm:$0xff]
        %v279 = vld [vmem:[%s268 + $0x50] sm:$0xff]
        %v280 = vld [vmem:[%s268 + $0x58] sm:$0xff]
        %v281 = vld [vmem:[%s268 + $0x60] sm:$0xff]
        %v282 = vld [vmem:[%s268 + $0x68] sm:$0xff]
        %v283 = vld [vmem:[%s268 + $0x70] sm:$0xff]
        %v284 = vld [vmem:[%s268 + $0x78] sm:$0xff]
        %285 = vmatpush.msra.mxu0 %v284
        %286 = vmatpush.msra.mxu0 %v283
        %287 = vmatpush.msra.mxu0 %v282
        %288 = vmatpush.msra.mxu0 %v281
        %289 = vmatpush.msra.mxu0 %v280
        %290 = vmatpush.msra.mxu0 %v279
        %291 = vmatpush.msra.mxu0 %v278
        %292 = vmatpush.msra.mxu0 %v277
        %293 = vmatpush.msra.mxu0 %v276
        %294 = vmatpush.msra.mxu0 %v275
        %295 = vmatpush.msra.mxu0 %v274
        %296 = vmatpush.msra.mxu0 %v273
        %297 = vmatpush.msra.mxu0 %v272
        %298 = vmatpush.msra.mxu0 %v271
        %299 = vmatpush.msra.mxu0 %v270
        %300 = vmatpush.msra.mxu0 %v269
        %301 = vmatmul.f32.gmra.mxu0 %v266
        %v302 = vpop.f32.mrf.mxu0
        %v303 = vadd.f32 0.0, %v302
        %304 = vmatmul.f32.gmra.mxu0 %v267
        %v305 = vpop.f32.mrf.mxu0
        %v306 = vadd.f32 0.0, %v305
        %307 = vdwg.mxu0
        %308 = vmatpush.msra.mxu0 %v265
        %309 = vmatpush.msra.mxu0 %v264
        %310 = vmatpush.msra.mxu0 %v263
        %311 = vmatpush.msra.mxu0 %v262
        %312 = vmatpush.msra.mxu0 %v261
        %313 = vmatpush.msra.mxu0 %v260
        %314 = vmatpush.msra.mxu0 %v259
        %315 = vmatpush.msra.mxu0 %v258
        %316 = vmatpush.msra.mxu0 %v257
        %317 = vmatpush.msra.mxu0 %v256
        %318 = vmatpush.msra.mxu0 %v255
        %319 = vmatpush.msra.mxu0 %v254
        %320 = vmatpush.msra.mxu0 %v253
        %321 = vmatpush.msra.mxu0 %v252
        %322 = vmatpush.msra.mxu0 %v251
        %323 = vmatpush.msra.mxu0 %v250
        %324 = vmatmul.f32.gmra.mxu0 %v248
        %v325 = vpop.f32.mrf.mxu0
        %v326 = vadd.f32 %v303, %v325
        %327 = vmatmul.f32.gmra.mxu0 %v249
        %v328 = vpop.f32.mrf.mxu0
        %v329 = vadd.f32 %v306, %v328
        %330 = vdwg.mxu0
        %v331 = vld [vmem:[#allocation2 + $0x2] sm:$0xff]
        %v332 = vld [vmem:[#allocation2 + $0xa] sm:$0xff]
        %s333 = scalar_lea.vmem [#allocation3], 256
        %v334 = vld [vmem:[%s333] sm:$0xff]
        %v335 = vld [vmem:[%s333 + $0x8] sm:$0xff]
        %v336 = vld [vmem:[%s333 + $0x10] sm:$0xff]
        %v337 = vld [vmem:[%s333 + $0x18] sm:$0xff]
        %v338 = vld [vmem:[%s333 + $0x20] sm:$0xff]
        %v339 = vld [vmem:[%s333 + $0x28] sm:$0xff]
        %v340 = vld [vmem:[%s333 + $0x30] sm:$0xff]
        %v341 = vld [vmem:[%s333 + $0x38] sm:$0xff]
        %v342 = vld [vmem:[%s333 + $0x40] sm:$0xff]
        %v343 = vld [vmem:[%s333 + $0x48] sm:$0xff]
        %v344 = vld [vmem:[%s333 + $0x50] sm:$0xff]
        %v345 = vld [vmem:[%s333 + $0x58] sm:$0xff]
        %v346 = vld [vmem:[%s333 + $0x60] sm:$0xff]
        %v347 = vld [vmem:[%s333 + $0x68] sm:$0xff]
        %v348 = vld [vmem:[%s333 + $0x70] sm:$0xff]
        %v349 = vld [vmem:[%s333 + $0x78] sm:$0xff]
        %350 = vmatpush.msra.mxu0 %v349
        %351 = vmatpush.msra.mxu0 %v348
        %352 = vmatpush.msra.mxu0 %v347
        %353 = vmatpush.msra.mxu0 %v346
        %354 = vmatpush.msra.mxu0 %v345
        %355 = vmatpush.msra.mxu0 %v344
        %356 = vmatpush.msra.mxu0 %v343
        %357 = vmatpush.msra.mxu0 %v342
        %358 = vmatpush.msra.mxu0 %v341
        %359 = vmatpush.msra.mxu0 %v340
        %360 = vmatpush.msra.mxu0 %v339
        %361 = vmatpush.msra.mxu0 %v338
        %362 = vmatpush.msra.mxu0 %v337
        %363 = vmatpush.msra.mxu0 %v336
        %364 = vmatpush.msra.mxu0 %v335
        %365 = vmatpush.msra.mxu0 %v334
        %366 = vmatmul.f32.gmra.mxu0 %v331
        %v367 = vpop.f32.mrf.mxu0
        %v368 = vadd.f32 0.0, %v367
        %369 = vmatmul.f32.gmra.mxu0 %v332
        %v370 = vpop.f32.mrf.mxu0
        %v371 = vadd.f32 0.0, %v370
        %372 = vdwg.mxu0
        %v373 = vadd.f32 %v326, %v368
        %v374 = vadd.f32 %v329, %v371
        %v375 = vld [vmem:[%s2] sm:$0x1]
        %v377 = vperm.slane %v375, 0
        %v379 = vadd.f32 %v373, %v377
        %v380 = vadd.f32 %v374, %v377
        %v381 = vmax.f32 %v379, 0.0
        %v382 = vmax.f32 %v380, 0.0
        %383 = vst [vmem:[#allocation2 + $0x1] sm:$0xff] %v381
        %384 = vst [vmem:[#allocation2 + $0x9] sm:$0xff] %v382
        %v385 = vld [vmem:[#allocation2] sm:$0xff]
        %v386 = vld [vmem:[#allocation2 + $0x8] sm:$0xff]
        %v387 = vld [vmem:[%s3] sm:$0xff]
        %v388 = vld [vmem:[%s3 + $0x8] sm:$0xff]
        %v389 = vld [vmem:[%s3 + $0x10] sm:$0xff]
        %v390 = vld [vmem:[%s3 + $0x18] sm:$0xff]
        %v391 = vld [vmem:[%s3 + $0x20] sm:$0xff]
        %v392 = vld [vmem:[%s3 + $0x28] sm:$0xff]
        %v393 = vld [vmem:[%s3 + $0x30] sm:$0xff]
        %v394 = vld [vmem:[%s3 + $0x38] sm:$0xff]
        %v395 = vld [vmem:[%s3 + $0x40] sm:$0xff]
        %v396 = vld [vmem:[%s3 + $0x48] sm:$0xff]
        %v397 = vld [vmem:[%s3 + $0x50] sm:$0xff]
        %v398 = vld [vmem:[%s3 + $0x58] sm:$0xff]
        %v399 = vld [vmem:[%s3 + $0x60] sm:$0xff]
        %v400 = vld [vmem:[%s3 + $0x68] sm:$0xff]
        %v401 = vld [vmem:[%s3 + $0x70] sm:$0xff]
        %v402 = vld [vmem:[%s3 + $0x78] sm:$0xff]
        %v403 = vld [vmem:[#allocation2 + $0x1] sm:$0xff]
        %v404 = vld [vmem:[#allocation2 + $0x9] sm:$0xff]
        %s405 = scalar_lea.vmem %s3, 128
        %v406 = vld [vmem:[%s405] sm:$0xff]
        %v407 = vld [vmem:[%s405 + $0x8] sm:$0xff]
        %v408 = vld [vmem:[%s405 + $0x10] sm:$0xff]
        %v409 = vld [vmem:[%s405 + $0x18] sm:$0xff]
        %v410 = vld [vmem:[%s405 + $0x20] sm:$0xff]
        %v411 = vld [vmem:[%s405 + $0x28] sm:$0xff]
        %v412 = vld [vmem:[%s405 + $0x30] sm:$0xff]
        %v413 = vld [vmem:[%s405 + $0x38] sm:$0xff]
        %v414 = vld [vmem:[%s405 + $0x40] sm:$0xff]
        %v415 = vld [vmem:[%s405 + $0x48] sm:$0xff]
        %v416 = vld [vmem:[%s405 + $0x50] sm:$0xff]
        %v417 = vld [vmem:[%s405 + $0x58] sm:$0xff]
        %v418 = vld [vmem:[%s405 + $0x60] sm:$0xff]
        %v419 = vld [vmem:[%s405 + $0x68] sm:$0xff]
        %v420 = vld [vmem:[%s405 + $0x70] sm:$0xff]
        %v421 = vld [vmem:[%s405 + $0x78] sm:$0xff]
        %422 = vmatpush.msra.mxu0 %v421
        %423 = vmatpush.msra.mxu0 %v420
        %424 = vmatpush.msra.mxu0 %v419
        %425 = vmatpush.msra.mxu0 %v418
        %426 = vmatpush.msra.mxu0 %v417
        %427 = vmatpush.msra.mxu0 %v416
        %428 = vmatpush.msra.mxu0 %v415
        %429 = vmatpush.msra.mxu0 %v414
        %430 = vmatpush.msra.mxu0 %v413
        %431 = vmatpush.msra.mxu0 %v412
        %432 = vmatpush.msra.mxu0 %v411
        %433 = vmatpush.msra.mxu0 %v410
        %434 = vmatpush.msra.mxu0 %v409
        %435 = vmatpush.msra.mxu0 %v408
        %436 = vmatpush.msra.mxu0 %v407
        %437 = vmatpush.msra.mxu0 %v406
        %438 = vmatmul.f32.gmra.mxu0 %v403
        %v439 = vpop.f32.mrf.mxu0
        %v440 = vadd.f32 0.0, %v439
        %441 = vmatmul.f32.gmra.mxu0 %v404
        %v442 = vpop.f32.mrf.mxu0
        %v443 = vadd.f32 0.0, %v442
        %444 = vdwg.mxu0
        %445 = vmatpush.msra.mxu0 %v402
        %446 = vmatpush.msra.mxu0 %v401
        %447 = vmatpush.msra.mxu0 %v400
        %448 = vmatpush.msra.mxu0 %v399
        %449 = vmatpush.msra.mxu0 %v398
        %450 = vmatpush.msra.mxu0 %v397
        %451 = vmatpush.msra.mxu0 %v396
        %452 = vmatpush.msra.mxu0 %v395
        %453 = vmatpush.msra.mxu0 %v394
        %454 = vmatpush.msra.mxu0 %v393
        %455 = vmatpush.msra.mxu0 %v392
        %456 = vmatpush.msra.mxu0 %v391
        %457 = vmatpush.msra.mxu0 %v390
        %458 = vmatpush.msra.mxu0 %v389
        %459 = vmatpush.msra.mxu0 %v388
        %460 = vmatpush.msra.mxu0 %v387
        %461 = vmatmul.f32.gmra.mxu0 %v385
        %v462 = vpop.f32.mrf.mxu0
        %v463 = vadd.f32 %v440, %v462
        %464 = vmatmul.f32.gmra.mxu0 %v386
        %v465 = vpop.f32.mrf.mxu0
        %v466 = vadd.f32 %v443, %v465
        %467 = vdwg.mxu0
        %v468 = vld [vmem:[#allocation2 + $0x2] sm:$0xff]
        %v469 = vld [vmem:[#allocation2 + $0xa] sm:$0xff]
        %s470 = scalar_lea.vmem %s3, 256
        %v471 = vld [vmem:[%s470] sm:$0xff]
        %v472 = vld [vmem:[%s470 + $0x8] sm:$0xff]
        %v473 = vld [vmem:[%s470 + $0x10] sm:$0xff]
        %v474 = vld [vmem:[%s470 + $0x18] sm:$0xff]
        %v475 = vld [vmem:[%s470 + $0x20] sm:$0xff]
        %v476 = vld [vmem:[%s470 + $0x28] sm:$0xff]
        %v477 = vld [vmem:[%s470 + $0x30] sm:$0xff]
        %v478 = vld [vmem:[%s470 + $0x38] sm:$0xff]
        %v479 = vld [vmem:[%s470 + $0x40] sm:$0xff]
        %v480 = vld [vmem:[%s470 + $0x48] sm:$0xff]
        %v481 = vld [vmem:[%s470 + $0x50] sm:$0xff]
        %v482 = vld [vmem:[%s470 + $0x58] sm:$0xff]
        %v483 = vld [vmem:[%s470 + $0x60] sm:$0xff]
        %v484 = vld [vmem:[%s470 + $0x68] sm:$0xff]
        %v485 = vld [vmem:[%s470 + $0x70] sm:$0xff]
        %v486 = vld [vmem:[%s470 + $0x78] sm:$0xff]
        %487 = vmatpush.msra.mxu0 %v486
        %488 = vmatpush.msra.mxu0 %v485
        %489 = vmatpush.msra.mxu0 %v484
        %490 = vmatpush.msra.mxu0 %v483
        %491 = vmatpush.msra.mxu0 %v482
        %492 = vmatpush.msra.mxu0 %v481
        %493 = vmatpush.msra.mxu0 %v480
        %494 = vmatpush.msra.mxu0 %v479
        %495 = vmatpush.msra.mxu0 %v478
        %496 = vmatpush.msra.mxu0 %v477
        %497 = vmatpush.msra.mxu0 %v476
        %498 = vmatpush.msra.mxu0 %v475
        %499 = vmatpush.msra.mxu0 %v474
        %500 = vmatpush.msra.mxu0 %v473
        %501 = vmatpush.msra.mxu0 %v472
        %502 = vmatpush.msra.mxu0 %v471
        %503 = vmatmul.f32.gmra.mxu0 %v468
        %v504 = vpop.f32.mrf.mxu0
        %v505 = vadd.f32 0.0, %v504
        %506 = vmatmul.f32.gmra.mxu0 %v469
        %v507 = vpop.f32.mrf.mxu0
        %v508 = vadd.f32 0.0, %v507
        %509 = vdwg.mxu0
        %v510 = vadd.f32 %v463, %v505
        %v511 = vadd.f32 %v466, %v508
        %v512 = vld [vmem:[%s4] sm:$0x1]
        %v514 = vperm.slane %v512, 0
        %v516 = vadd.f32 %v510, %v514
        %v517 = vadd.f32 %v511, %v514
        %518 = vst [vmem:[%s241] sm:$0xff] %v516
        %519 = vst [vmem:[%s241 + $0x8] sm:$0xff] %v517
        %p520 = scmp.lt.s32.totalorder %s17, 1
        %s521 = scalar_select %p520, %s17, 1
        %s522 = smul.addr %s521, 2
        %s523 = smul.addr %s522, 8
        %s524 = scalar_lea.vmem %s5, %s523
        // Predicated region
        $region45: #{fwd.1} parent=39 // pred_check
          %p525 = pneg %p145
        $region46: #{fwd.1} parent=39 // pred_check_branch
          %527 = sbr.rel (%p525) target = $region48
        $region47: #{fwd.1} parent=39 // pred_region
          _
        $region48: #{fwd.1} parent=39 // pred_fallthru
          _
      $region40: #{fwd.1} parent=5 // pred_fallthru
        _
      %p528 = scmp.le.s32.totalorder 2, %s12
      // Predicated region
      $region49: #{fwd.1} parent=5 // pred_check
        %p529 = pneg %p528
      $region50: #{fwd.1} parent=5 // pred_check_branch
        %531 = sbr.rel (%p529) target = $region52
      $region51: #{fwd.1} parent=5 // pred_region
        %s532 = ssub.s32 %s12, 2
        // Predicated region
        $region53: #{fwd.1} parent=51 // pred_check
          %p533 = pneg %p151
        $region54: #{fwd.1} parent=51 // pred_check_branch
          %535 = sbr.rel (%p533) target = $region56
        $region55: #{fwd.1} parent=51 // pred_region
          %p536 = scmp.lt.s32.totalorder %s18, 1
          %s537 = scalar_select %p536, %s18, 1
          %s538 = smul.addr %s537, 2
          %s539 = smul.addr %s538, 8
          %s540 = scalar_lea.vmem %s5, %s539
        $region56: #{fwd.1} parent=51 // pred_fallthru
          _
      $region52: #{fwd.1} parent=5 // pred_fallthru
        _
    $region6: #{fwd.1} parent=1 // loop_footer
      %s16 = sadd.s32 1, %s12
    $region7: #{fwd.1} parent=1 // loop_footer_branch
      %11 = sbr.rel target = $region3
    $region8: #{fwd.1} parent=1 // loop_exit
      _
    %541 = vsyncpa [#allocation4], 1
    %s542 = scalar_lea.sflag [#allocation4], 1
    %543 = vsyncpa %s542, 1

</llo_original>
